<compile_context>
chip_gen: v7x
topology: tpu7x:2x2x1
jax: 0.10.0
libtpu: 0.0.40
codegen_flags: <defaults>
</compile_context>

<pallas_src>
import functools

import jax
import jax.numpy as jnp
from jax import lax
from jax.experimental import pallas as pl
from jax.experimental.pallas import tpu as pltpu


def _infonce_kernel(a_ref, p_ref, logits_ref, row_loss_ref,
                    a_n_sc, m_sc, l_sc, diag_sc,
                    *, inv_temp, b_valid, tn, mask_cols):
    i = pl.program_id(0)   # anchor-row tile
    j = pl.program_id(1)   # positive-row (logit-column) tile, reduction axis

    # Init per-row-tile state and cache the normalized anchor tile once.
    @pl.when(j == 0)
    def _():
        a = a_ref[...].astype(jnp.float32)                               # [TM, D]
        inv_a = lax.rsqrt(jnp.maximum(jnp.sum(a * a, axis=1, keepdims=True),
                                      jnp.float32(1e-24)))               # EUP
        a_n_sc[...] = a * inv_a
        m_sc[...] = jnp.full_like(m_sc, -jnp.inf)
        l_sc[...] = jnp.zeros_like(l_sc)
        diag_sc[...] = jnp.zeros_like(diag_sc)

    p = p_ref[...].astype(jnp.float32)                                   # [TN, D]
    inv_p = lax.rsqrt(jnp.maximum(jnp.sum(p * p, axis=1, keepdims=True),
                                  jnp.float32(1e-24)))
    p_n = p * inv_p
    a_n = a_n_sc[...]

    # [TM, TN] similarity tile: contract over D directly (no p_n.T / vxpose).
    logits = lax.dot_general(a_n, p_n,
                             dimension_numbers=(((1,), (1,)), ((), ())),
                             preferred_element_type=jnp.float32)
    logits = logits * jnp.float32(inv_temp)
    logits_ref[...] = logits

    # Mask padded columns to -inf for the softmax (only when padding exists).
    if mask_cols:
        col = lax.broadcasted_iota(jnp.int32, logits.shape, 1) + j * tn
        masked = jnp.where(col < b_valid, logits, -jnp.inf)
    else:
        masked = logits

    # Online log-sum-exp across column tiles (keepdims -> native [TM, 1] layout).
    m_new = jnp.maximum(m_sc[...], jnp.max(masked, axis=1, keepdims=True))
    alpha = jnp.exp(m_sc[...] - m_new)
    l_sc[...] = alpha * l_sc[...] + jnp.sum(jnp.exp(masked - m_new),
                                            axis=1, keepdims=True)
    m_sc[...] = m_new

    # Diagonal logits[r, r] live in column tile j == i (TM == TN):
    # a row-wise dot, no O(B^2) iota/where pass.
    @pl.when(j == i)
    def _():
        diag_sc[...] = (jnp.sum(a_n * p_n, axis=1, keepdims=True)
                        * jnp.float32(inv_temp))

    # Finalize per-row cross-entropy on the last column tile.
    @pl.when(j == pl.num_programs(1) - 1)
    def _():
        row_loss_ref[...] = (m_sc[...] + jnp.log(l_sc[...])) - diag_sc[...]


def infonce_v2(anchor, positive, temperature):
    """Returns (loss, logits) matching InfoNCE_v2.forward (reduction='mean')."""
    B, D = anchor.shape

    # Lane-dense tiling: 128 (v5e MXU-native) for small B, 256 for larger B
    # (matches the 256x256 MXU on v6e/v7x and stays inside v7x's VMEM budget).
    tile = 128 if B <= 128 else 256
    B_pad = ((B + tile - 1) // tile) * tile
    D_pad = ((D + 127) // 128) * 128
    # TODO(synk): for very large D add a third (K) grid axis over D chunks.

    a_pad = jnp.pad(anchor.astype(jnp.float32),
                    ((0, B_pad - B), (0, D_pad - D)))
    p_pad = jnp.pad(positive.astype(jnp.float32),
                    ((0, B_pad - B), (0, D_pad - D)))

    n_tiles = B_pad // tile
    kernel = functools.partial(
        _infonce_kernel,
        inv_temp=float(1.0 / float(temperature)),
        b_valid=B,
        tn=tile,
        mask_cols=(B_pad != B),
    )

    logits_pad, row_loss = pl.pallas_call(
        kernel,
        out_shape=(
            jax.ShapeDtypeStruct((B_pad, B_pad), jnp.float32),
            jax.ShapeDtypeStruct((B_pad, 1), jnp.float32),
        ),
        grid_spec=pltpu.PrefetchScalarGridSpec(
            num_scalar_prefetch=0,
            grid=(n_tiles, n_tiles),
            in_specs=[
                pl.BlockSpec((tile, D_pad), lambda i, j: (i, 0)),   # anchor rows
                pl.BlockSpec((tile, D_pad), lambda i, j: (j, 0)),   # positive rows
            ],
            out_specs=(
                pl.BlockSpec((tile, tile), lambda i, j: (i, j)),    # logits tile
                pl.BlockSpec((tile, 1), lambda i, j: (i, 0)),       # per-row loss
            ),
            scratch_shapes=[
                pltpu.VMEM((tile, D_pad), jnp.float32),   # cached normalized anchor
                pltpu.VMEM((tile, 1), jnp.float32),       # running max m
                pltpu.VMEM((tile, 1), jnp.float32),       # running sum l
                pltpu.VMEM((tile, 1), jnp.float32),       # diagonal logits
            ],
        ),
        compiler_params=pltpu.CompilerParams(
            dimension_semantics=("parallel", "arbitrary")),
    )(a_pad, p_pad)

    loss = jnp.sum(row_loss[:B, 0]) * (1.0 / B)
    logits = logits_pad[:B, :B]
    return loss, logits


def _reference(anchor, positive, temperature):
    a = anchor / jnp.maximum(
        jnp.linalg.norm(anchor, axis=1, keepdims=True), 1e-12)
    p = positive / jnp.maximum(
        jnp.linalg.norm(positive, axis=1, keepdims=True), 1e-12)
    logits = (a @ p.T) / temperature
    labels = jnp.arange(anchor.shape[0])
    logp = jax.nn.log_softmax(logits, axis=1)
    loss = -jnp.mean(logp[jnp.arange(anchor.shape[0]), labels])
    return loss, logits


if __name__ == "__main__":
    B, D = 8, 32
    temperature = 0.07

    key = jax.random.PRNGKey(0)
    k_a, k_p = jax.random.split(key)
    anchor = jax.random.normal(k_a, (B, D), dtype=jnp.float32)
    positive = jax.random.normal(k_p, (B, D), dtype=jnp.float32)

    loss, logits = infonce_v2(anchor, positive, temperature)
    jax.block_until_ready((loss, logits))

    ref_loss, ref_logits = _reference(anchor, positive, temperature)
    assert jnp.allclose(loss, ref_loss, atol=1e-4, rtol=1e-4), (loss, ref_loss)
    assert jnp.allclose(logits, ref_logits, atol=1e-4, rtol=1e-4)

    print("KERNEL_OK")
</pallas_src>

<mosaic_0001>
module attributes {stable_mosaic.version = 11 : i64} {
  func.func @_infonce_kernel(%arg0: i32, %arg1: i32, %arg2: memref<128x128xf32, #tpu.memory_space<vmem>>, %arg3: memref<128x128xf32, #tpu.memory_space<vmem>>, %arg4: memref<128x128xf32, #tpu.memory_space<vmem>>, %arg5: memref<128x1xf32, #tpu.memory_space<vmem>>, %arg6: memref<128x128xf32, #tpu.memory_space<vmem>>, %arg7: memref<128x1xf32, #tpu.memory_space<vmem>>, %arg8: memref<128x1xf32, #tpu.memory_space<vmem>>, %arg9: memref<128x1xf32, #tpu.memory_space<vmem>>) attributes {dimension_semantics = [#tpu.dimension_semantics<parallel>, #tpu.dimension_semantics<arbitrary>], iteration_bounds = array<i64: 1, 1>, scalar_prefetch = 0 : i64, scratch_operands = 4 : i64, tpu.core_type = #tpu.core_type<tc>, window_params = [{transform_indices = @transform_0, window_bounds = array<i64: 128, 128>}, {transform_indices = @transform_1, window_bounds = array<i64: 128, 128>}, {transform_indices = @transform_2, window_bounds = array<i64: 128, 128>}, {transform_indices = @transform_3, window_bounds = array<i64: 128, 1>}]} {
    %c0_i32 = arith.constant 0 : i32
    %0 = arith.cmpi eq, %arg1, %c0_i32 : i32
    %1 = arith.extui %0 : i1 to i32
    %c0_i32_0 = arith.constant 0 : i32
    %2 = arith.cmpi ne, %1, %c0_i32_0 : i32
    scf.if %2 {
      %c0_25 = arith.constant 0 : index
      %c0_26 = arith.constant 0 : index
      %48 = vector.load %arg2[%c0_25, %c0_26] : memref<128x128xf32, #tpu.memory_space<vmem>>, vector<128x128xf32>
      %49 = arith.mulf %48, %48 : vector<128x128xf32>
      %cst_27 = arith.constant dense<0.000000e+00> : vector<128xf32>
      %50 = vector.multi_reduction <add>, %49, %cst_27 [1] : vector<128x128xf32> to vector<128xf32>
      %51 = vector.shape_cast %50 : vector<128xf32> to vector<128x1xf32>
      %cst_28 = arith.constant 1.000000e-24 : f32
      %52 = vector.broadcast %cst_28 : f32 to vector<128x1xf32>
      %53 = arith.maximumf %51, %52 : vector<128x1xf32>
      %54 = math.rsqrt %53 : vector<128x1xf32>
      %55 = vector.broadcast %54 : vector<128x1xf32> to vector<128x128xf32>
      %56 = arith.mulf %48, %55 : vector<128x128xf32>
      %c0_29 = arith.constant 0 : index
      %c0_30 = arith.constant 0 : index
      %57 = vector.load %arg6[%c0_29, %c0_30] : memref<128x128xf32, #tpu.memory_space<vmem>>, vector<128x128xf32>
      tpu.vector_store %arg6[%c0_29, %c0_30], %56 {strides = array<i32>} : memref<128x128xf32, #tpu.memory_space<vmem>>, vector<128x128xf32>,
      %cst_31 = arith.constant 0xFF800000 : f32
      %58 = vector.broadcast %cst_31 : f32 to vector<128x1xf32>
      %c0_32 = arith.constant 0 : index
      %c0_33 = arith.constant 0 : index
      %59 = vector.load %arg7[%c0_32, %c0_33] : memref<128x1xf32, #tpu.memory_space<vmem>>, vector<128x1xf32>
      tpu.vector_store %arg7[%c0_32, %c0_33], %58 {strides = array<i32>} : memref<128x1xf32, #tpu.memory_space<vmem>>, vector<128x1xf32>,
      %cst_34 = arith.constant 0.000000e+00 : f32
      %60 = vector.broadcast %cst_34 : f32 to vector<128x1xf32>
      %c0_35 = arith.constant 0 : index
      %c0_36 = arith.constant 0 : index
      %61 = vector.load %arg8[%c0_35, %c0_36] : memref<128x1xf32, #tpu.memory_space<vmem>>, vector<128x1xf32>
      tpu.vector_store %arg8[%c0_35, %c0_36], %60 {strides = array<i32>} : memref<128x1xf32, #tpu.memory_space<vmem>>, vector<128x1xf32>,
      %cst_37 = arith.constant 0.000000e+00 : f32
      %62 = vector.broadcast %cst_37 : f32 to vector<128x1xf32>
      %c0_38 = arith.constant 0 : index
      %c0_39 = arith.constant 0 : index
      %63 = vector.load %arg9[%c0_38, %c0_39] : memref<128x1xf32, #tpu.memory_space<vmem>>, vector<128x1xf32>
      tpu.vector_store %arg9[%c0_38, %c0_39], %62 {strides = array<i32>} : memref<128x1xf32, #tpu.memory_space<vmem>>, vector<128x1xf32>,
    } else {
    }
    %c0 = arith.constant 0 : index
    %c0_1 = arith.constant 0 : index
    %3 = vector.load %arg3[%c0, %c0_1] : memref<128x128xf32, #tpu.memory_space<vmem>>, vector<128x128xf32>
    %4 = arith.mulf %3, %3 : vector<128x128xf32>
    %cst = arith.constant dense<0.000000e+00> : vector<128xf32>
    %5 = vector.multi_reduction <add>, %4, %cst [1] : vector<128x128xf32> to vector<128xf32>
    %6 = vector.shape_cast %5 : vector<128xf32> to vector<128x1xf32>
    %cst_2 = arith.constant 1.000000e-24 : f32
    %7 = vector.broadcast %cst_2 : f32 to vector<128x1xf32>
    %8 = arith.maximumf %6, %7 : vector<128x1xf32>
    %9 = math.rsqrt %8 : vector<128x1xf32>
    %10 = vector.broadcast %9 : vector<128x1xf32> to vector<128x128xf32>
    %11 = arith.mulf %3, %10 : vector<128x128xf32>
    %c0_3 = arith.constant 0 : index
    %c0_4 = arith.constant 0 : index
    %12 = vector.load %arg6[%c0_3, %c0_4] : memref<128x128xf32, #tpu.memory_space<vmem>>, vector<128x128xf32>
    %cst_5 = arith.constant dense<0.000000e+00> : vector<128x128xf32>
    %13 = tpu.matmul %12, %11, %cst_5 {dimension_numbers = #tpu.dot_dimension_numbers<[1], [1], [0], [0], [0, 0, 1, 0], [], []>} : vector<128x128xf32>, vector<128x128xf32>, vector<128x128xf32> -> vector<128x128xf32>
    %cst_6 = arith.constant 14.2857141 : f32
    %14 = vector.broadcast %cst_6 : f32 to vector<128x128xf32>
    %15 = arith.mulf %13, %14 : vector<128x128xf32>
    %c0_7 = arith.constant 0 : index
    %c0_8 = arith.constant 0 : index
    %16 = vector.load %arg4[%c0_7, %c0_8] : memref<128x128xf32, #tpu.memory_space<vmem>>, vector<128x128xf32>
    tpu.vector_store %arg4[%c0_7, %c0_8], %15 {strides = array<i32>} : memref<128x128xf32, #tpu.memory_space<vmem>>, vector<128x128xf32>,
    %17 = tpu.iota {dimensions = array<i32: 1>} : vector<128x128xi32>
    %c128_i32 = arith.constant 128 : i32
    %18 = arith.muli %arg1, %c128_i32 : i32
    %19 = vector.broadcast %18 : i32 to vector<128x128xi32>
    %20 = arith.addi %17, %19 : vector<128x128xi32>
    %c8_i32 = arith.constant 8 : i32
    %21 = vector.broadcast %c8_i32 : i32 to vector<128x128xi32>
    %22 = arith.cmpi slt, %20, %21 : vector<128x128xi32>
    %cst_9 = arith.constant 0xFF800000 : f32
    %23 = vector.broadcast %cst_9 : f32 to vector<128x128xf32>
    %24 = arith.select %22, %15, %23 : vector<128x128xi1>, vector<128x128xf32>
    %c0_10 = arith.constant 0 : index
    %c0_11 = arith.constant 0 : index
    %25 = vector.load %arg7[%c0_10, %c0_11] : memref<128x1xf32, #tpu.memory_space<vmem>>, vector<128x1xf32>
    %cst_12 = arith.constant dense<0xFF800000> : vector<128xf32>
    %26 = vector.multi_reduction <maximumf>, %24, %cst_12 [1] : vector<128x128xf32> to vector<128xf32>
    %27 = vector.shape_cast %26 : vector<128xf32> to vector<128x1xf32>
    %28 = arith.maximumf %25, %27 : vector<128x1xf32>
    %c0_13 = arith.constant 0 : index
    %c0_14 = arith.constant 0 : index
    %29 = vector.load %arg7[%c0_13, %c0_14] : memref<128x1xf32, #tpu.memory_space<vmem>>, vector<128x1xf32>
    %30 = arith.subf %29, %28 : vector<128x1xf32>
    %31 = math.exp %30 : vector<128x1xf32>
    %c0_15 = arith.constant 0 : index
    %c0_16 = arith.constant 0 : index
    %32 = vector.load %arg8[%c0_15, %c0_16] : memref<128x1xf32, #tpu.memory_space<vmem>>, vector<128x1xf32>
    %33 = arith.mulf %31, %32 : vector<128x1xf32>
    %34 = vector.broadcast %28 : vector<128x1xf32> to vector<128x128xf32>
    %35 = arith.subf %24, %34 : vector<128x128xf32>
    %36 = math.exp %35 : vector<128x128xf32>
    %cst_17 = arith.constant dense<0.000000e+00> : vector<128xf32>
    %37 = vector.multi_reduction <add>, %36, %cst_17 [1] : vector<128x128xf32> to vector<128xf32>
    %38 = vector.shape_cast %37 : vector<128xf32> to vector<128x1xf32>
    %39 = arith.addf %33, %38 : vector<128x1xf32>
    %c0_18 = arith.constant 0 : index
    %c0_19 = arith.constant 0 : index
    %40 = vector.load %arg8[%c0_18, %c0_19] : memref<128x1xf32, #tpu.memory_space<vmem>>, vector<128x1xf32>
    tpu.vector_store %arg8[%c0_18, %c0_19], %39 {strides = array<i32>} : memref<128x1xf32, #tpu.memory_space<vmem>>, vector<128x1xf32>,
    %c0_20 = arith.constant 0 : index
    %c0_21 = arith.constant 0 : index
    %41 = vector.load %arg7[%c0_20, %c0_21] : memref<128x1xf32, #tpu.memory_space<vmem>>, vector<128x1xf32>
    tpu.vector_store %arg7[%c0_20, %c0_21], %28 {strides = array<i32>} : memref<128x1xf32, #tpu.memory_space<vmem>>, vector<128x1xf32>,
    %42 = arith.cmpi eq, %arg1, %arg0 : i32
    %43 = arith.extui %42 : i1 to i32
    %c0_i32_22 = arith.constant 0 : i32
    %44 = arith.cmpi ne, %43, %c0_i32_22 : i32
    scf.if %44 {
      %48 = arith.mulf %12, %11 : vector<128x128xf32>
      %cst_25 = arith.constant dense<0.000000e+00> : vector<128xf32>
      %49 = vector.multi_reduction <add>, %48, %cst_25 [1] : vector<128x128xf32> to vector<128xf32>
      %50 = vector.shape_cast %49 : vector<128xf32> to vector<128x1xf32>
      %cst_26 = arith.constant 14.2857141 : f32
      %51 = vector.broadcast %cst_26 : f32 to vector<128x1xf32>
      %52 = arith.mulf %50, %51 : vector<128x1xf32>
      %c0_27 = arith.constant 0 : index
      %c0_28 = arith.constant 0 : index
      %53 = vector.load %arg9[%c0_27, %c0_28] : memref<128x1xf32, #tpu.memory_space<vmem>>, vector<128x1xf32>
      tpu.vector_store %arg9[%c0_27, %c0_28], %52 {strides = array<i32>} : memref<128x1xf32, #tpu.memory_space<vmem>>, vector<128x1xf32>,
    } else {
    }
    %c0_i32_23 = arith.constant 0 : i32
    %45 = arith.cmpi eq, %arg1, %c0_i32_23 : i32
    %46 = arith.extui %45 : i1 to i32
    %c0_i32_24 = arith.constant 0 : i32
    %47 = arith.cmpi ne, %46, %c0_i32_24 : i32
    scf.if %47 {
      %c0_25 = arith.constant 0 : index
      %c0_26 = arith.constant 0 : index
      %48 = vector.load %arg7[%c0_25, %c0_26] : memref<128x1xf32, #tpu.memory_space<vmem>>, vector<128x1xf32>
      %c0_27 = arith.constant 0 : index
      %c0_28 = arith.constant 0 : index
      %49 = vector.load %arg8[%c0_27, %c0_28] : memref<128x1xf32, #tpu.memory_space<vmem>>, vector<128x1xf32>
      %50 = math.log %49 : vector<128x1xf32>
      %51 = arith.addf %48, %50 : vector<128x1xf32>
      %c0_29 = arith.constant 0 : index
      %c0_30 = arith.constant 0 : index
      %52 = vector.load %arg9[%c0_29, %c0_30] : memref<128x1xf32, #tpu.memory_space<vmem>>, vector<128x1xf32>
      %53 = arith.subf %51, %52 : vector<128x1xf32>
      %c0_31 = arith.constant 0 : index
      %c0_32 = arith.constant 0 : index
      %54 = vector.load %arg5[%c0_31, %c0_32] : memref<128x1xf32, #tpu.memory_space<vmem>>, vector<128x1xf32>
      tpu.vector_store %arg5[%c0_31, %c0_32], %53 {strides = array<i32>} : memref<128x1xf32, #tpu.memory_space<vmem>>, vector<128x1xf32>,
    } else {
    }
    return
  }
  func.func @transform_0(%arg0: i32, %arg1: i32) -> (i32, i32) {
    %c0_i32 = arith.constant 0 : i32
    %c0_i32_0 = arith.constant 0 : i32
    return %arg0, %c0_i32 : i32, i32
  }
  func.func @transform_1(%arg0: i32, %arg1: i32) -> (i32, i32) {
    %c0_i32 = arith.constant 0 : i32
    %c0_i32_0 = arith.constant 0 : i32
    return %arg1, %c0_i32 : i32, i32
  }
  func.func @transform_2(%arg0: i32, %arg1: i32) -> (i32, i32) {
    %c0_i32 = arith.constant 0 : i32
    return %arg0, %arg1 : i32, i32
  }
  func.func @transform_3(%arg0: i32, %arg1: i32) -> (i32, i32) {
    %c0_i32 = arith.constant 0 : i32
    %c0_i32_0 = arith.constant 0 : i32
    return %arg0, %c0_i32 : i32, i32
  }
}

</mosaic_0001>

<llo_original>
// kernel: tpu_custom_call.1
$region0: #{tpu_custom_call.1}
  #allocation0 [shape = 'u32[]', space=smem, size = 0x4, offset = 0x4, fixed_abs, tag = 'smem constant byte address 0x4 - core index']
  #allocation1 [shape = 'u32[144,128]{1,0:T(1,128)}', space=vmem, size = 0x12000, scoped, tag = 'internal scratch']
  #allocation2 [shape = 'f32[128,128]{1,0:T(8,128)}', space=vmem, size = 0x10000, scoped, tag = 'scratch operand']
  #allocation3 [shape = 'f32[128,1]{1,0:T(8,128)}', space=vmem, size = 0x10000, scoped, tag = 'scratch operand']
  #allocation4 [shape = 'f32[128,1]{1,0:T(8,128)}', space=vmem, size = 0x10000, scoped, tag = 'scratch operand']
  #allocation5 [shape = 'f32[128,1]{1,0:T(8,128)}', space=vmem, size = 0x10000, scoped, tag = 'scratch operand']
  %s0 = inlined_call_operand.hbm [shape: f32[128,128], index: 0, kind: input, shape index: {}]
  %s1 = inlined_call_operand.hbm [shape: f32[128,128], index: 1, kind: input, shape index: {}]
  %s2 = inlined_call_operand.hbm [shape: f32[128,128], index: 2, kind: output, shape index: {0}]
  %s3 = inlined_call_operand.vmem [shape: f32[128,1], index: 3, kind: output, shape index: {1}]
  %4 = xla_tuple %s2, %s3
  %s5 = sld [smem:[#allocation0]]
  $region46: #{tpu_custom_call.1} parent=0
    _
  %s7 = ssub.s32 1, %s5
  %s8 = scalar_select 0, %s7, %s5
  $region1: #{tpu_custom_call.1} parent=0
    #allocation6 [shape = 'u8[65536]{0}', space=vmem, size = 0x10000, scoped, tag = 'input window, operand 0, single buffered']
    #allocation7 [shape = 's32[1]{0}', space=sflag, size = 0x4, scoped, tag = 'scoped memory for tpu_custom_call.1']
    #allocation8 [shape = 's32[1]{0}', space=sflag, size = 0x4, scoped, tag = 'scoped memory for tpu_custom_call.1']
    #allocation9 [shape = 'u8[65536]{0}', space=vmem, size = 0x10000, scoped, tag = 'input window, operand 1, single buffered']
    #allocation10 [shape = 's32[1]{0}', space=sflag, size = 0x4, scoped, tag = 'scoped memory for tpu_custom_call.1']
    #allocation11 [shape = 'u8[65536]{0}', space=vmem, size = 0x10000, scoped, tag = 'output window, operand 0, single buffered']
    %9 = vsyncpa [#allocation7], 0
    %10 = vsyncpa [#allocation10], 0
    %11 = vsyncpa [#allocation8], 0
    // Predicated region
    $region2: #{tpu_custom_call.1} parent=1 // pred_check
      _
    $region3: #{tpu_custom_call.1} parent=1 // pred_check_branch
      %13 = sbr.rel (0) target = $region5
    $region4: #{tpu_custom_call.1} parent=1 // pred_region
      %s15 = ssub.s32 2048, 2048
      %16 = vsyncadd [#allocation7], %s15
      %s17 = sshll.u32 [#allocation6], 4
      %s18 = int_to_ptr.vmem [resolvable:$true] %s17
      %23 = dma.hbm_to_vmem [thread:$0]  %s0, 2048, %s18, [#allocation7], 128, 128, 8
    $region5: #{tpu_custom_call.1} parent=1 // pred_fallthru
      _
    // Predicated region
    $region6: #{tpu_custom_call.1} parent=1 // pred_check
      _
    $region7: #{tpu_custom_call.1} parent=1 // pred_check_branch
      %25 = sbr.rel (0) target = $region9
    $region8: #{tpu_custom_call.1} parent=1 // pred_region
      %s27 = ssub.s32 2048, 2048
      %28 = vsyncadd [#allocation10], %s27
      %s29 = sshll.u32 [#allocation9], 4
      %s30 = int_to_ptr.vmem [resolvable:$true] %s29
      %35 = dma.hbm_to_vmem [thread:$0]  %s1, 2048, %s30, [#allocation10], 128, 128, 8
    $region9: #{tpu_custom_call.1} parent=1 // pred_fallthru
      _
    // Predicated region
    $region10: #{tpu_custom_call.1} parent=1 // pred_check
      _
    $region11: #{tpu_custom_call.1} parent=1 // pred_check_branch
      %37 = sbr.rel (0) target = $region13
    $region12: #{tpu_custom_call.1} parent=1 // pred_region
      %38 = dma.done [#allocation7], 2048
    $region13: #{tpu_custom_call.1} parent=1 // pred_fallthru
      _
    // Predicated region
    $region14: #{tpu_custom_call.1} parent=1 // pred_check
      _
    $region15: #{tpu_custom_call.1} parent=1 // pred_check_branch
      %40 = sbr.rel (0) target = $region17
    $region16: #{tpu_custom_call.1} parent=1 // pred_region
      %41 = dma.done [#allocation10], 2048
    $region17: #{tpu_custom_call.1} parent=1 // pred_fallthru
      _
    %p42 = scmp.eq.s32.totalorder 0, 0
    // Predicated region
    $region18: #{tpu_custom_call.1} parent=1 // pred_check
      %p43 = pneg %p42
    $region19: #{tpu_custom_call.1} parent=1 // pred_check_branch
      %45 = sbr.rel (%p43) target = $region21
    $region20: #{tpu_custom_call.1} parent=1 // pred_region
      %v46 = vld [vmem:[#allocation6] sm:$0xff]
      %v47 = vld [vmem:[#allocation6 + $0x8] sm:$0xff]
      %v48 = vld [vmem:[#allocation6 + $0x10] sm:$0xff]
      %v49 = vld [vmem:[#allocation6 + $0x18] sm:$0xff]
      %v50 = vld [vmem:[#allocation6 + $0x20] sm:$0xff]
      %v51 = vld [vmem:[#allocation6 + $0x28] sm:$0xff]
      %v52 = vld [vmem:[#allocation6 + $0x30] sm:$0xff]
      %v53 = vld [vmem:[#allocation6 + $0x38] sm:$0xff]
      %v54 = vld [vmem:[#allocation6 + $0x40] sm:$0xff]
      %v55 = vld [vmem:[#allocation6 + $0x48] sm:$0xff]
      %v56 = vld [vmem:[#allocation6 + $0x50] sm:$0xff]
      %v57 = vld [vmem:[#allocation6 + $0x58] sm:$0xff]
      %v58 = vld [vmem:[#allocation6 + $0x60] sm:$0xff]
      %v59 = vld [vmem:[#allocation6 + $0x68] sm:$0xff]
      %v60 = vld [vmem:[#allocation6 + $0x70] sm:$0xff]
      %v61 = vld [vmem:[#allocation6 + $0x78] sm:$0xff]
      %v62 = vmul.f32 %v46, %v46
      %v63 = vmul.f32 %v47, %v47
      %v64 = vmul.f32 %v48, %v48
      %v65 = vmul.f32 %v49, %v49
      %v66 = vmul.f32 %v50, %v50
      %v67 = vmul.f32 %v51, %v51
      %v68 = vmul.f32 %v52, %v52
      %v69 = vmul.f32 %v53, %v53
      %v70 = vmul.f32 %v54, %v54
      %v71 = vmul.f32 %v55, %v55
      %v72 = vmul.f32 %v56, %v56
      %v73 = vmul.f32 %v57, %v57
      %v74 = vmul.f32 %v58, %v58
      %v75 = vmul.f32 %v59, %v59
      %v76 = vmul.f32 %v60, %v60
      %v77 = vmul.f32 %v61, %v61
      %78 = vadd.xlane.f32.xlu0 %v62
      %v79 = vpop.xlane.xlu0 %78
      %80 = vadd.xlane.f32.xlu0 %v63
      %v81 = vpop.xlane.xlu0 %80
      %82 = vadd.xlane.f32.xlu0 %v64
      %v83 = vpop.xlane.xlu0 %82
      %84 = vadd.xlane.f32.xlu0 %v65
      %v85 = vpop.xlane.xlu0 %84
      %86 = vadd.xlane.f32.xlu0 %v66
      %v87 = vpop.xlane.xlu0 %86
      %88 = vadd.xlane.f32.xlu0 %v67
      %v89 = vpop.xlane.xlu0 %88
      %90 = vadd.xlane.f32.xlu0 %v68
      %v91 = vpop.xlane.xlu0 %90
      %92 = vadd.xlane.f32.xlu0 %v69
      %v93 = vpop.xlane.xlu0 %92
      %94 = vadd.xlane.f32.xlu0 %v70
      %v95 = vpop.xlane.xlu0 %94
      %96 = vadd.xlane.f32.xlu0 %v71
      %v97 = vpop.xlane.xlu0 %96
      %98 = vadd.xlane.f32.xlu0 %v72
      %v99 = vpop.xlane.xlu0 %98
      %100 = vadd.xlane.f32.xlu0 %v73
      %v101 = vpop.xlane.xlu0 %100
      %102 = vadd.xlane.f32.xlu0 %v74
      %v103 = vpop.xlane.xlu0 %102
      %104 = vadd.xlane.f32.xlu0 %v75
      %v105 = vpop.xlane.xlu0 %104
      %106 = vadd.xlane.f32.xlu0 %v76
      %v107 = vpop.xlane.xlu0 %106
      %108 = vadd.xlane.f32.xlu0 %v77
      %v109 = vpop.xlane.xlu0 %108
      %v110 = vmax.f32 %v79, 1e-24
      %v111 = vmax.f32 %v81, 1e-24
      %v112 = vmax.f32 %v83, 1e-24
      %v113 = vmax.f32 %v85, 1e-24
      %v114 = vmax.f32 %v87, 1e-24
      %v115 = vmax.f32 %v89, 1e-24
      %v116 = vmax.f32 %v91, 1e-24
      %v117 = vmax.f32 %v93, 1e-24
      %v118 = vmax.f32 %v95, 1e-24
      %v119 = vmax.f32 %v97, 1e-24
      %v120 = vmax.f32 %v99, 1e-24
      %v121 = vmax.f32 %v101, 1e-24
      %v122 = vmax.f32 %v103, 1e-24
      %v123 = vmax.f32 %v105, 1e-24
      %v124 = vmax.f32 %v107, 1e-24
      %v125 = vmax.f32 %v109, 1e-24
      %v126 = vrsqrt.pop %v110
      %v127 = vrsqrt.pop %v111
      %v128 = vrsqrt.pop %v112
      %v129 = vrsqrt.pop %v113
      %v130 = vrsqrt.pop %v114
      %v131 = vrsqrt.pop %v115
      %v132 = vrsqrt.pop %v116
      %v133 = vrsqrt.pop %v117
      %v134 = vrsqrt.pop %v118
      %v135 = vrsqrt.pop %v119
      %v136 = vrsqrt.pop %v120
      %v137 = vrsqrt.pop %v121
      %v138 = vrsqrt.pop %v122
      %v139 = vrsqrt.pop %v123
      %v140 = vrsqrt.pop %v124
      %v141 = vrsqrt.pop %v125
      %v142 = vmul.f32 %v46, %v126
      %v143 = vmul.f32 %v47, %v127
      %v144 = vmul.f32 %v48, %v128
      %v145 = vmul.f32 %v49, %v129
      %v146 = vmul.f32 %v50, %v130
      %v147 = vmul.f32 %v51, %v131
      %v148 = vmul.f32 %v52, %v132
      %v149 = vmul.f32 %v53, %v133
      %v150 = vmul.f32 %v54, %v134
      %v151 = vmul.f32 %v55, %v135
      %v152 = vmul.f32 %v56, %v136
      %v153 = vmul.f32 %v57, %v137
      %v154 = vmul.f32 %v58, %v138
      %v155 = vmul.f32 %v59, %v139
      %v156 = vmul.f32 %v60, %v140
      %v157 = vmul.f32 %v61, %v141
      %158 = vst [vmem:[#allocation2] sm:$0xff] %v142
      %159 = vst [vmem:[#allocation2 + $0x8] sm:$0xff] %v143
      %160 = vst [vmem:[#allocation2 + $0x10] sm:$0xff] %v144
      %161 = vst [vmem:[#allocation2 + $0x18] sm:$0xff] %v145
      %162 = vst [vmem:[#allocation2 + $0x20] sm:$0xff] %v146
      %163 = vst [vmem:[#allocation2 + $0x28] sm:$0xff] %v147
      %164 = vst [vmem:[#allocation2 + $0x30] sm:$0xff] %v148
      %165 = vst [vmem:[#allocation2 + $0x38] sm:$0xff] %v149
      %166 = vst [vmem:[#allocation2 + $0x40] sm:$0xff] %v150
      %167 = vst [vmem:[#allocation2 + $0x48] sm:$0xff] %v151
      %168 = vst [vmem:[#allocation2 + $0x50] sm:$0xff] %v152
      %169 = vst [vmem:[#allocation2 + $0x58] sm:$0xff] %v153
      %170 = vst [vmem:[#allocation2 + $0x60] sm:$0xff] %v154
      %171 = vst [vmem:[#allocation2 + $0x68] sm:$0xff] %v155
      %172 = vst [vmem:[#allocation2 + $0x70] sm:$0xff] %v156
      %173 = vst [vmem:[#allocation2 + $0x78] sm:$0xff] %v157
      %vm174 = vcmask 7168
      %175 = vst.msk [vmem:[#allocation3] sm:$0xff] %vm174, -inf
      %176 = vst.msk [vmem:[#allocation3 + $0x8] sm:$0xff] %vm174, -inf
      %177 = vst.msk [vmem:[#allocation3 + $0x10] sm:$0xff] %vm174, -inf
      %178 = vst.msk [vmem:[#allocation3 + $0x18] sm:$0xff] %vm174, -inf
      %179 = vst.msk [vmem:[#allocation3 + $0x20] sm:$0xff] %vm174, -inf
      %180 = vst.msk [vmem:[#allocation3 + $0x28] sm:$0xff] %vm174, -inf
      %181 = vst.msk [vmem:[#allocation3 + $0x30] sm:$0xff] %vm174, -inf
      %182 = vst.msk [vmem:[#allocation3 + $0x38] sm:$0xff] %vm174, -inf
      %183 = vst.msk [vmem:[#allocation3 + $0x40] sm:$0xff] %vm174, -inf
      %184 = vst.msk [vmem:[#allocation3 + $0x48] sm:$0xff] %vm174, -inf
      %185 = vst.msk [vmem:[#allocation3 + $0x50] sm:$0xff] %vm174, -inf
      %186 = vst.msk [vmem:[#allocation3 + $0x58] sm:$0xff] %vm174, -inf
      %187 = vst.msk [vmem:[#allocation3 + $0x60] sm:$0xff] %vm174, -inf
      %188 = vst.msk [vmem:[#allocation3 + $0x68] sm:$0xff] %vm174, -inf
      %189 = vst.msk [vmem:[#allocation3 + $0x70] sm:$0xff] %vm174, -inf
      %190 = vst.msk [vmem:[#allocation3 + $0x78] sm:$0xff] %vm174, -inf
      %191 = vst.msk [vmem:[#allocation4] sm:$0xff] %vm174, 0.0
      %192 = vst.msk [vmem:[#allocation4 + $0x8] sm:$0xff] %vm174, 0.0
      %193 = vst.msk [vmem:[#allocation4 + $0x10] sm:$0xff] %vm174, 0.0
      %194 = vst.msk [vmem:[#allocation4 + $0x18] sm:$0xff] %vm174, 0.0
      %195 = vst.msk [vmem:[#allocation4 + $0x20] sm:$0xff] %vm174, 0.0
      %196 = vst.msk [vmem:[#allocation4 + $0x28] sm:$0xff] %vm174, 0.0
      %197 = vst.msk [vmem:[#allocation4 + $0x30] sm:$0xff] %vm174, 0.0
      %198 = vst.msk [vmem:[#allocation4 + $0x38] sm:$0xff] %vm174, 0.0
      %199 = vst.msk [vmem:[#allocation4 + $0x40] sm:$0xff] %vm174, 0.0
      %200 = vst.msk [vmem:[#allocation4 + $0x48] sm:$0xff] %vm174, 0.0
      %201 = vst.msk [vmem:[#allocation4 + $0x50] sm:$0xff] %vm174, 0.0
      %202 = vst.msk [vmem:[#allocation4 + $0x58] sm:$0xff] %vm174, 0.0
      %203 = vst.msk [vmem:[#allocation4 + $0x60] sm:$0xff] %vm174, 0.0
      %204 = vst.msk [vmem:[#allocation4 + $0x68] sm:$0xff] %vm174, 0.0
      %205 = vst.msk [vmem:[#allocation4 + $0x70] sm:$0xff] %vm174, 0.0
      %206 = vst.msk [vmem:[#allocation4 + $0x78] sm:$0xff] %vm174, 0.0
      %207 = vst.msk [vmem:[#allocation5] sm:$0xff] %vm174, 0.0
      %208 = vst.msk [vmem:[#allocation5 + $0x8] sm:$0xff] %vm174, 0.0
      %209 = vst.msk [vmem:[#allocation5 + $0x10] sm:$0xff] %vm174, 0.0
      %210 = vst.msk [vmem:[#allocation5 + $0x18] sm:$0xff] %vm174, 0.0
      %211 = vst.msk [vmem:[#allocation5 + $0x20] sm:$0xff] %vm174, 0.0
      %212 = vst.msk [vmem:[#allocation5 + $0x28] sm:$0xff] %vm174, 0.0
      %213 = vst.msk [vmem:[#allocation5 + $0x30] sm:$0xff] %vm174, 0.0
      %214 = vst.msk [vmem:[#allocation5 + $0x38] sm:$0xff] %vm174, 0.0
      %215 = vst.msk [vmem:[#allocation5 + $0x40] sm:$0xff] %vm174, 0.0
      %216 = vst.msk [vmem:[#allocation5 + $0x48] sm:$0xff] %vm174, 0.0
      %217 = vst.msk [vmem:[#allocation5 + $0x50] sm:$0xff] %vm174, 0.0
      %218 = vst.msk [vmem:[#allocation5 + $0x58] sm:$0xff] %vm174, 0.0
      %219 = vst.msk [vmem:[#allocation5 + $0x60] sm:$0xff] %vm174, 0.0
      %220 = vst.msk [vmem:[#allocation5 + $0x68] sm:$0xff] %vm174, 0.0
      %221 = vst.msk [vmem:[#allocation5 + $0x70] sm:$0xff] %vm174, 0.0
      %222 = vst.msk [vmem:[#allocation5 + $0x78] sm:$0xff] %vm174, 0.0
    $region21: #{tpu_custom_call.1} parent=1 // pred_fallthru
      _
    %v223 = vld [vmem:[#allocation9] sm:$0xff]
    %v224 = vld [vmem:[#allocation9 + $0x8] sm:$0xff]
    %v225 = vld [vmem:[#allocation9 + $0x10] sm:$0xff]
    %v226 = vld [vmem:[#allocation9 + $0x18] sm:$0xff]
    %v227 = vld [vmem:[#allocation9 + $0x20] sm:$0xff]
    %v228 = vld [vmem:[#allocation9 + $0x28] sm:$0xff]
    %v229 = vld [vmem:[#allocation9 + $0x30] sm:$0xff]
    %v230 = vld [vmem:[#allocation9 + $0x38] sm:$0xff]
    %v231 = vld [vmem:[#allocation9 + $0x40] sm:$0xff]
    %v232 = vld [vmem:[#allocation9 + $0x48] sm:$0xff]
    %v233 = vld [vmem:[#allocation9 + $0x50] sm:$0xff]
    %v234 = vld [vmem:[#allocation9 + $0x58] sm:$0xff]
    %v235 = vld [vmem:[#allocation9 + $0x60] sm:$0xff]
    %v236 = vld [vmem:[#allocation9 + $0x68] sm:$0xff]
    %v237 = vld [vmem:[#allocation9 + $0x70] sm:$0xff]
    %v238 = vld [vmem:[#allocation9 + $0x78] sm:$0xff]
    %v239 = vmul.f32 %v223, %v223
    %v240 = vmul.f32 %v224, %v224
    %v241 = vmul.f32 %v225, %v225
    %v242 = vmul.f32 %v226, %v226
    %v243 = vmul.f32 %v227, %v227
    %v244 = vmul.f32 %v228, %v228
    %v245 = vmul.f32 %v229, %v229
    %v246 = vmul.f32 %v230, %v230
    %v247 = vmul.f32 %v231, %v231
    %v248 = vmul.f32 %v232, %v232
    %v249 = vmul.f32 %v233, %v233
    %v250 = vmul.f32 %v234, %v234
    %v251 = vmul.f32 %v235, %v235
    %v252 = vmul.f32 %v236, %v236
    %v253 = vmul.f32 %v237, %v237
    %v254 = vmul.f32 %v238, %v238
    %255 = vadd.xlane.f32.xlu0 %v239
    %v256 = vpop.xlane.xlu0 %255
    %257 = vadd.xlane.f32.xlu0 %v240
    %v258 = vpop.xlane.xlu0 %257
    %259 = vadd.xlane.f32.xlu0 %v241
    %v260 = vpop.xlane.xlu0 %259
    %261 = vadd.xlane.f32.xlu0 %v242
    %v262 = vpop.xlane.xlu0 %261
    %263 = vadd.xlane.f32.xlu0 %v243
    %v264 = vpop.xlane.xlu0 %263
    %265 = vadd.xlane.f32.xlu0 %v244
    %v266 = vpop.xlane.xlu0 %265
    %267 = vadd.xlane.f32.xlu0 %v245
    %v268 = vpop.xlane.xlu0 %267
    %269 = vadd.xlane.f32.xlu0 %v246
    %v270 = vpop.xlane.xlu0 %269
    %271 = vadd.xlane.f32.xlu0 %v247
    %v272 = vpop.xlane.xlu0 %271
    %273 = vadd.xlane.f32.xlu0 %v248
    %v274 = vpop.xlane.xlu0 %273
    %275 = vadd.xlane.f32.xlu0 %v249
    %v276 = vpop.xlane.xlu0 %275
    %277 = vadd.xlane.f32.xlu0 %v250
    %v278 = vpop.xlane.xlu0 %277
    %279 = vadd.xlane.f32.xlu0 %v251
    %v280 = vpop.xlane.xlu0 %279
    %281 = vadd.xlane.f32.xlu0 %v252
    %v282 = vpop.xlane.xlu0 %281
    %283 = vadd.xlane.f32.xlu0 %v253
    %v284 = vpop.xlane.xlu0 %283
    %285 = vadd.xlane.f32.xlu0 %v254
    %v286 = vpop.xlane.xlu0 %285
    %v287 = vmax.f32 %v256, 1e-24
    %v288 = vmax.f32 %v258, 1e-24
    %v289 = vmax.f32 %v260, 1e-24
    %v290 = vmax.f32 %v262, 1e-24
    %v291 = vmax.f32 %v264, 1e-24
    %v292 = vmax.f32 %v266, 1e-24
    %v293 = vmax.f32 %v268, 1e-24
    %v294 = vmax.f32 %v270, 1e-24
    %v295 = vmax.f32 %v272, 1e-24
    %v296 = vmax.f32 %v274, 1e-24
    %v297 = vmax.f32 %v276, 1e-24
    %v298 = vmax.f32 %v278, 1e-24
    %v299 = vmax.f32 %v280, 1e-24
    %v300 = vmax.f32 %v282, 1e-24
    %v301 = vmax.f32 %v284, 1e-24
    %v302 = vmax.f32 %v286, 1e-24
    %v303 = vrsqrt.pop %v287
    %v304 = vrsqrt.pop %v288
    %v305 = vrsqrt.pop %v289
    %v306 = vrsqrt.pop %v290
    %v307 = vrsqrt.pop %v291
    %v308 = vrsqrt.pop %v292
    %v309 = vrsqrt.pop %v293
    %v310 = vrsqrt.pop %v294
    %v311 = vrsqrt.pop %v295
    %v312 = vrsqrt.pop %v296
    %v313 = vrsqrt.pop %v297
    %v314 = vrsqrt.pop %v298
    %v315 = vrsqrt.pop %v299
    %v316 = vrsqrt.pop %v300
    %v317 = vrsqrt.pop %v301
    %v318 = vrsqrt.pop %v302
    %v319 = vmul.f32 %v223, %v303
    %v320 = vmul.f32 %v224, %v304
    %v321 = vmul.f32 %v225, %v305
    %v322 = vmul.f32 %v226, %v306
    %v323 = vmul.f32 %v227, %v307
    %v324 = vmul.f32 %v228, %v308
    %v325 = vmul.f32 %v229, %v309
    %v326 = vmul.f32 %v230, %v310
    %v327 = vmul.f32 %v231, %v311
    %v328 = vmul.f32 %v232, %v312
    %v329 = vmul.f32 %v233, %v313
    %v330 = vmul.f32 %v234, %v314
    %v331 = vmul.f32 %v235, %v315
    %v332 = vmul.f32 %v236, %v316
    %v333 = vmul.f32 %v237, %v317
    %v334 = vmul.f32 %v238, %v318
    %v335 = vld [vmem:[#allocation2] sm:$0xff]
    %v336 = vld [vmem:[#allocation2 + $0x8] sm:$0xff]
    %v337 = vld [vmem:[#allocation2 + $0x10] sm:$0xff]
    %v338 = vld [vmem:[#allocation2 + $0x18] sm:$0xff]
    %v339 = vld [vmem:[#allocation2 + $0x20] sm:$0xff]
    %v340 = vld [vmem:[#allocation2 + $0x28] sm:$0xff]
    %v341 = vld [vmem:[#allocation2 + $0x30] sm:$0xff]
    %v342 = vld [vmem:[#allocation2 + $0x38] sm:$0xff]
    %v343 = vld [vmem:[#allocation2 + $0x40] sm:$0xff]
    %v344 = vld [vmem:[#allocation2 + $0x48] sm:$0xff]
    %v345 = vld [vmem:[#allocation2 + $0x50] sm:$0xff]
    %v346 = vld [vmem:[#allocation2 + $0x58] sm:$0xff]
    %v347 = vld [vmem:[#allocation2 + $0x60] sm:$0xff]
    %v348 = vld [vmem:[#allocation2 + $0x68] sm:$0xff]
    %v349 = vld [vmem:[#allocation2 + $0x70] sm:$0xff]
    %v350 = vld [vmem:[#allocation2 + $0x78] sm:$0xff]
    %351 = vmatprep.subr.mxu0 0.0
    %352 = vmatpush1.xpose.msra.mxu0 %v319
    %353 = vmatprep.subr.mxu0 0.0
    %354 = vmatpush1.xpose.msra.mxu0 %v320
    %355 = vmatprep.subr.mxu0 0.0
    %356 = vmatpush1.xpose.msra.mxu0 %v321
    %357 = vmatprep.subr.mxu0 0.0
    %358 = vmatpush1.xpose.msra.mxu0 %v322
    %359 = vmatprep.subr.mxu0 0.0
    %360 = vmatpush1.xpose.msra.mxu0 %v323
    %361 = vmatprep.subr.mxu0 0.0
    %362 = vmatpush1.xpose.msra.mxu0 %v324
    %363 = vmatprep.subr.mxu0 0.0
    %364 = vmatpush1.xpose.msra.mxu0 %v325
    %365 = vmatprep.subr.mxu0 0.0
    %366 = vmatpush1.xpose.msra.mxu0 %v326
    %367 = vmatprep.subr.mxu0 0.0
    %368 = vmatpush1.xpose.msra.mxu0 %v327
    %369 = vmatprep.subr.mxu0 0.0
    %370 = vmatpush1.xpose.msra.mxu0 %v328
    %371 = vmatprep.subr.mxu0 0.0
    %372 = vmatpush1.xpose.msra.mxu0 %v329
    %373 = vmatprep.subr.mxu0 0.0
    %374 = vmatpush1.xpose.msra.mxu0 %v330
    %375 = vmatprep.subr.mxu0 0.0
    %376 = vmatpush1.xpose.msra.mxu0 %v331
    %377 = vmatprep.subr.mxu0 0.0
    %378 = vmatpush1.xpose.msra.mxu0 %v332
    %379 = vmatprep.subr.mxu0 0.0
    %380 = vmatpush1.xpose.msra.mxu0 %v333
    %381 = vmatprep.subr.mxu0 0.0
    %382 = vmatpush1.xpose.msra.mxu0 %v334
    %383 = vmatprep.subr.mxu0 0.0
    %384 = vmatpush1.xpose.msra.mxu0 0.0
    %385 = vmatprep.subr.mxu0 0.0
    %386 = vmatpush1.xpose.msra.mxu0 0.0
    %387 = vmatprep.subr.mxu0 0.0
    %388 = vmatpush1.xpose.msra.mxu0 0.0
    %389 = vmatprep.subr.mxu0 0.0
    %390 = vmatpush1.xpose.msra.mxu0 0.0
    %391 = vmatprep.subr.mxu0 0.0
    %392 = vmatpush1.xpose.msra.mxu0 0.0
    %393 = vmatprep.subr.mxu0 0.0
    %394 = vmatpush1.xpose.msra.mxu0 0.0
    %395 = vmatprep.subr.mxu0 0.0
    %396 = vmatpush1.xpose.msra.mxu0 0.0
    %397 = vmatprep.subr.mxu0 0.0
    %398 = vmatpush1.xpose.msra.mxu0 0.0
    %399 = vmatprep.subr.mxu0 0.0
    %400 = vmatpush1.xpose.msra.mxu0 0.0
    %401 = vmatprep.subr.mxu0 0.0
    %402 = vmatpush1.xpose.msra.mxu0 0.0
    %403 = vmatprep.subr.mxu0 0.0
    %404 = vmatpush1.xpose.msra.mxu0 0.0
    %405 = vmatprep.subr.mxu0 0.0
    %406 = vmatpush1.xpose.msra.mxu0 0.0
    %407 = vmatprep.subr.mxu0 0.0
    %408 = vmatpush1.xpose.msra.mxu0 0.0
    %409 = vmatprep.subr.mxu0 0.0
    %410 = vmatpush1.xpose.msra.mxu0 0.0
    %411 = vmatprep.subr.mxu0 0.0
    %412 = vmatpush1.xpose.msra.mxu0 0.0
    %413 = vmatprep.subr.mxu0 0.0
    %414 = vmatpush1.xpose.msra.mxu0 0.0
    %415 = vmatprep.mubr.f32.mxu0 0.0
    %416 = vmatmul.mubr.f32.gmra.mrb[0].mxu0 %v335
    %v417 = vpop.f32.mrb[0].mxu0
    %v418 = vadd.f32 0.0, %v417
    %v419 = vpop.f32.mrb[0].mxu0
    %420 = vmatprep.mubr.f32.mxu0 0.0
    %421 = vmatmul.mubr.f32.gmra.mrb[0].mxu0 %v336
    %v422 = vpop.f32.mrb[0].mxu0
    %v423 = vadd.f32 0.0, %v422
    %v424 = vpop.f32.mrb[0].mxu0
    %425 = vmatprep.mubr.f32.mxu0 0.0
    %426 = vmatmul.mubr.f32.gmra.mrb[0].mxu0 %v337
    %v427 = vpop.f32.mrb[0].mxu0
    %v428 = vadd.f32 0.0, %v427
    %v429 = vpop.f32.mrb[0].mxu0
    %430 = vmatprep.mubr.f32.mxu0 0.0
    %431 = vmatmul.mubr.f32.gmra.mrb[0].mxu0 %v338
    %v432 = vpop.f32.mrb[0].mxu0
    %v433 = vadd.f32 0.0, %v432
    %v434 = vpop.f32.mrb[0].mxu0
    %435 = vmatprep.mubr.f32.mxu0 0.0
    %436 = vmatmul.mubr.f32.gmra.mrb[0].mxu0 %v339
    %v437 = vpop.f32.mrb[0].mxu0
    %v438 = vadd.f32 0.0, %v437
    %v439 = vpop.f32.mrb[0].mxu0
    %440 = vmatprep.mubr.f32.mxu0 0.0
    %441 = vmatmul.mubr.f32.gmra.mrb[0].mxu0 %v340
    %v442 = vpop.f32.mrb[0].mxu0
    %v443 = vadd.f32 0.0, %v442
    %v444 = vpop.f32.mrb[0].mxu0
    %445 = vmatprep.mubr.f32.mxu0 0.0
    %446 = vmatmul.mubr.f32.gmra.mrb[0].mxu0 %v341
    %v447 = vpop.f32.mrb[0].mxu0
    %v448 = vadd.f32 0.0, %v447
    %v449 = vpop.f32.mrb[0].mxu0
    %450 = vmatprep.mubr.f32.mxu0 0.0
    %451 = vmatmul.mubr.f32.gmra.mrb[0].mxu0 %v342
    %v452 = vpop.f32.mrb[0].mxu0
    %v453 = vadd.f32 0.0, %v452
    %v454 = vpop.f32.mrb[0].mxu0
    %455 = vmatprep.mubr.f32.mxu0 0.0
    %456 = vmatmul.mubr.f32.gmra.mrb[0].mxu0 %v343
    %v457 = vpop.f32.mrb[0].mxu0
    %v458 = vadd.f32 0.0, %v457
    %v459 = vpop.f32.mrb[0].mxu0
    %460 = vmatprep.mubr.f32.mxu0 0.0
    %461 = vmatmul.mubr.f32.gmra.mrb[0].mxu0 %v344
    %v462 = vpop.f32.mrb[0].mxu0
    %v463 = vadd.f32 0.0, %v462
    %v464 = vpop.f32.mrb[0].mxu0
    %465 = vmatprep.mubr.f32.mxu0 0.0
    %466 = vmatmul.mubr.f32.gmra.mrb[0].mxu0 %v345
    %v467 = vpop.f32.mrb[0].mxu0
    %v468 = vadd.f32 0.0, %v467
    %v469 = vpop.f32.mrb[0].mxu0
    %470 = vmatprep.mubr.f32.mxu0 0.0
    %471 = vmatmul.mubr.f32.gmra.mrb[0].mxu0 %v346
    %v472 = vpop.f32.mrb[0].mxu0
    %v473 = vadd.f32 0.0, %v472
    %v474 = vpop.f32.mrb[0].mxu0
    %475 = vmatprep.mubr.f32.mxu0 0.0
    %476 = vmatmul.mubr.f32.gmra.mrb[0].mxu0 %v347
    %v477 = vpop.f32.mrb[0].mxu0
    %v478 = vadd.f32 0.0, %v477
    %v479 = vpop.f32.mrb[0].mxu0
    %480 = vmatprep.mubr.f32.mxu0 0.0
    %481 = vmatmul.mubr.f32.gmra.mrb[0].mxu0 %v348
    %v482 = vpop.f32.mrb[0].mxu0
    %v483 = vadd.f32 0.0, %v482
    %v484 = vpop.f32.mrb[0].mxu0
    %485 = vmatprep.mubr.f32.mxu0 0.0
    %486 = vmatmul.mubr.f32.gmra.mrb[0].mxu0 %v349
    %v487 = vpop.f32.mrb[0].mxu0
    %v488 = vadd.f32 0.0, %v487
    %v489 = vpop.f32.mrb[0].mxu0
    %490 = vmatprep.mubr.f32.mxu0 0.0
    %491 = vmatmul.mubr.f32.gmra.mrb[0].mxu0 %v350
    %v492 = vpop.f32.mrb[0].mxu0
    %v493 = vadd.f32 0.0, %v492
    %v494 = vpop.f32.mrb[0].mxu0
    %495 = vdwg.mxu0
    %v496 = vmul.f32 %v418, 14.285714
    %v497 = vmul.f32 %v423, 14.285714
    %v498 = vmul.f32 %v428, 14.285714
    %v499 = vmul.f32 %v433, 14.285714
    %v500 = vmul.f32 %v438, 14.285714
    %v501 = vmul.f32 %v443, 14.285714
    %v502 = vmul.f32 %v448, 14.285714
    %v503 = vmul.f32 %v453, 14.285714
    %v504 = vmul.f32 %v458, 14.285714
    %v505 = vmul.f32 %v463, 14.285714
    %v506 = vmul.f32 %v468, 14.285714
    %v507 = vmul.f32 %v473, 14.285714
    %v508 = vmul.f32 %v478, 14.285714
    %v509 = vmul.f32 %v483, 14.285714
    %v510 = vmul.f32 %v488, 14.285714
    %v511 = vmul.f32 %v493, 14.285714
    %512 = vst [vmem:[#allocation11] sm:$0xff] %v496
    %513 = vst [vmem:[#allocation11 + $0x8] sm:$0xff] %v497
    %514 = vst [vmem:[#allocation11 + $0x10] sm:$0xff] %v498
    %515 = vst [vmem:[#allocation11 + $0x18] sm:$0xff] %v499
    %516 = vst [vmem:[#allocation11 + $0x20] sm:$0xff] %v500
    %517 = vst [vmem:[#allocation11 + $0x28] sm:$0xff] %v501
    %518 = vst [vmem:[#allocation11 + $0x30] sm:$0xff] %v502
    %519 = vst [vmem:[#allocation11 + $0x38] sm:$0xff] %v503
    %520 = vst [vmem:[#allocation11 + $0x40] sm:$0xff] %v504
    %521 = vst [vmem:[#allocation11 + $0x48] sm:$0xff] %v505
    %522 = vst [vmem:[#allocation11 + $0x50] sm:$0xff] %v506
    %523 = vst [vmem:[#allocation11 + $0x58] sm:$0xff] %v507
    %524 = vst [vmem:[#allocation11 + $0x60] sm:$0xff] %v508
    %525 = vst [vmem:[#allocation11 + $0x68] sm:$0xff] %v509
    %526 = vst [vmem:[#allocation11 + $0x70] sm:$0xff] %v510
    %527 = vst [vmem:[#allocation11 + $0x78] sm:$0xff] %v511
    %v528 = vlaneseq
    %v529 = vand.u32 %v528, 127
    %s530 = smul.u32 0, 128
    %v531 = vstv %s530
    %v532 = vadd.s32 %v529, %v531
    %vm533 = vcmp.lt.s32.totalorder %v532, 8
    %v534 = vsel %vm533, %v496, -inf
    %v535 = vsel %vm533, %v497, -inf
    %v536 = vsel %vm533, %v498, -inf
    %v537 = vsel %vm533, %v499, -inf
    %v538 = vsel %vm533, %v500, -inf
    %v539 = vsel %vm533, %v501, -inf
    %v540 = vsel %vm533, %v502, -inf
    %v541 = vsel %vm533, %v503, -inf
    %v542 = vsel %vm533, %v504, -inf
    %v543 = vsel %vm533, %v505, -inf
    %v544 = vsel %vm533, %v506, -inf
    %v545 = vsel %vm533, %v507, -inf
    %v546 = vsel %vm533, %v508, -inf
    %v547 = vsel %vm533, %v509, -inf
    %v548 = vsel %vm533, %v510, -inf
    %v549 = vsel %vm533, %v511, -inf
    %v550 = vld [vmem:[#allocation3] sm:$0xff]
    %v551 = vld [vmem:[#allocation3 + $0x8] sm:$0xff]
    %v552 = vld [vmem:[#allocation3 + $0x10] sm:$0xff]
    %v553 = vld [vmem:[#allocation3 + $0x18] sm:$0xff]
    %v554 = vld [vmem:[#allocation3 + $0x20] sm:$0xff]
    %v555 = vld [vmem:[#allocation3 + $0x28] sm:$0xff]
    %v556 = vld [vmem:[#allocation3 + $0x30] sm:$0xff]
    %v557 = vld [vmem:[#allocation3 + $0x38] sm:$0xff]
    %v558 = vld [vmem:[#allocation3 + $0x40] sm:$0xff]
    %v559 = vld [vmem:[#allocation3 + $0x48] sm:$0xff]
    %v560 = vld [vmem:[#allocation3 + $0x50] sm:$0xff]
    %v561 = vld [vmem:[#allocation3 + $0x58] sm:$0xff]
    %v562 = vld [vmem:[#allocation3 + $0x60] sm:$0xff]
    %v563 = vld [vmem:[#allocation3 + $0x68] sm:$0xff]
    %v564 = vld [vmem:[#allocation3 + $0x70] sm:$0xff]
    %v565 = vld [vmem:[#allocation3 + $0x78] sm:$0xff]
    %566 = vmax.xlane.f32.xlu0 %v534
    %v567 = vpop.xlane.xlu0 %566
    %568 = vmax.xlane.f32.xlu0 %v535
    %v569 = vpop.xlane.xlu0 %568
    %570 = vmax.xlane.f32.xlu0 %v536
    %v571 = vpop.xlane.xlu0 %570
    %572 = vmax.xlane.f32.xlu0 %v537
    %v573 = vpop.xlane.xlu0 %572
    %574 = vmax.xlane.f32.xlu0 %v538
    %v575 = vpop.xlane.xlu0 %574
    %576 = vmax.xlane.f32.xlu0 %v539
    %v577 = vpop.xlane.xlu0 %576
    %578 = vmax.xlane.f32.xlu0 %v540
    %v579 = vpop.xlane.xlu0 %578
    %580 = vmax.xlane.f32.xlu0 %v541
    %v581 = vpop.xlane.xlu0 %580
    %582 = vmax.xlane.f32.xlu0 %v542
    %v583 = vpop.xlane.xlu0 %582
    %584 = vmax.xlane.f32.xlu0 %v543
    %v585 = vpop.xlane.xlu0 %584
    %586 = vmax.xlane.f32.xlu0 %v544
    %v587 = vpop.xlane.xlu0 %586
    %588 = vmax.xlane.f32.xlu0 %v545
    %v589 = vpop.xlane.xlu0 %588
    %590 = vmax.xlane.f32.xlu0 %v546
    %v591 = vpop.xlane.xlu0 %590
    %592 = vmax.xlane.f32.xlu0 %v547
    %v593 = vpop.xlane.xlu0 %592
    %594 = vmax.xlane.f32.xlu0 %v548
    %v595 = vpop.xlane.xlu0 %594
    %596 = vmax.xlane.f32.xlu0 %v549
    %v597 = vpop.xlane.xlu0 %596
    %v598 = vmax.f32 %v550, %v567
    %v599 = vmax.f32 %v551, %v569
    %v600 = vmax.f32 %v552, %v571
    %v601 = vmax.f32 %v553, %v573
    %v602 = vmax.f32 %v554, %v575
    %v603 = vmax.f32 %v555, %v577
    %v604 = vmax.f32 %v556, %v579
    %v605 = vmax.f32 %v557, %v581
    %v606 = vmax.f32 %v558, %v583
    %v607 = vmax.f32 %v559, %v585
    %v608 = vmax.f32 %v560, %v587
    %v609 = vmax.f32 %v561, %v589
    %v610 = vmax.f32 %v562, %v591
    %v611 = vmax.f32 %v563, %v593
    %v612 = vmax.f32 %v564, %v595
    %v613 = vmax.f32 %v565, %v597
    %v614 = vsub.f32 %v550, %v598
    %v615 = vsub.f32 %v551, %v599
    %v616 = vsub.f32 %v552, %v600
    %v617 = vsub.f32 %v553, %v601
    %v618 = vsub.f32 %v554, %v602
    %v619 = vsub.f32 %v555, %v603
    %v620 = vsub.f32 %v556, %v604
    %v621 = vsub.f32 %v557, %v605
    %v622 = vsub.f32 %v558, %v606
    %v623 = vsub.f32 %v559, %v607
    %v624 = vsub.f32 %v560, %v608
    %v625 = vsub.f32 %v561, %v609
    %v626 = vsub.f32 %v562, %v610
    %v627 = vsub.f32 %v563, %v611
    %v628 = vsub.f32 %v564, %v612
    %v629 = vsub.f32 %v565, %v613
    %v630 = vmul.f32 %v614, 1.442695
    %v631 = vpow.pop %v630
    %v632 = vmul.f32 %v615, 1.442695
    %v633 = vpow.pop %v632
    %v634 = vmul.f32 %v616, 1.442695
    %v635 = vpow.pop %v634
    %v636 = vmul.f32 %v617, 1.442695
    %v637 = vpow.pop %v636
    %v638 = vmul.f32 %v618, 1.442695
    %v639 = vpow.pop %v638
    %v640 = vmul.f32 %v619, 1.442695
    %v641 = vpow.pop %v640
    %v642 = vmul.f32 %v620, 1.442695
    %v643 = vpow.pop %v642
    %v644 = vmul.f32 %v621, 1.442695
    %v645 = vpow.pop %v644
    %v646 = vmul.f32 %v622, 1.442695
    %v647 = vpow.pop %v646
    %v648 = vmul.f32 %v623, 1.442695
    %v649 = vpow.pop %v648
    %v650 = vmul.f32 %v624, 1.442695
    %v651 = vpow.pop %v650
    %v652 = vmul.f32 %v625, 1.442695
    %v653 = vpow.pop %v652
    %v654 = vmul.f32 %v626, 1.442695
    %v655 = vpow.pop %v654
    %v656 = vmul.f32 %v627, 1.442695
    %v657 = vpow.pop %v656
    %v658 = vmul.f32 %v628, 1.442695
    %v659 = vpow.pop %v658
    %v660 = vmul.f32 %v629, 1.442695
    %v661 = vpow.pop %v660
    %v662 = vld [vmem:[#allocation4] sm:$0xff]
    %v663 = vld [vmem:[#allocation4 + $0x8] sm:$0xff]
    %v664 = vld [vmem:[#allocation4 + $0x10] sm:$0xff]
    %v665 = vld [vmem:[#allocation4 + $0x18] sm:$0xff]
    %v666 = vld [vmem:[#allocation4 + $0x20] sm:$0xff]
    %v667 = vld [vmem:[#allocation4 + $0x28] sm:$0xff]
    %v668 = vld [vmem:[#allocation4 + $0x30] sm:$0xff]
    %v669 = vld [vmem:[#allocation4 + $0x38] sm:$0xff]
    %v670 = vld [vmem:[#allocation4 + $0x40] sm:$0xff]
    %v671 = vld [vmem:[#allocation4 + $0x48] sm:$0xff]
    %v672 = vld [vmem:[#allocation4 + $0x50] sm:$0xff]
    %v673 = vld [vmem:[#allocation4 + $0x58] sm:$0xff]
    %v674 = vld [vmem:[#allocation4 + $0x60] sm:$0xff]
    %v675 = vld [vmem:[#allocation4 + $0x68] sm:$0xff]
    %v676 = vld [vmem:[#allocation4 + $0x70] sm:$0xff]
    %v677 = vld [vmem:[#allocation4 + $0x78] sm:$0xff]
    %v678 = vmul.f32 %v631, %v662
    %v679 = vmul.f32 %v633, %v663
    %v680 = vmul.f32 %v635, %v664
    %v681 = vmul.f32 %v637, %v665
    %v682 = vmul.f32 %v639, %v666
    %v683 = vmul.f32 %v641, %v667
    %v684 = vmul.f32 %v643, %v668
    %v685 = vmul.f32 %v645, %v669
    %v686 = vmul.f32 %v647, %v670
    %v687 = vmul.f32 %v649, %v671
    %v688 = vmul.f32 %v651, %v672
    %v689 = vmul.f32 %v653, %v673
    %v690 = vmul.f32 %v655, %v674
    %v691 = vmul.f32 %v657, %v675
    %v692 = vmul.f32 %v659, %v676
    %v693 = vmul.f32 %v661, %v677
    %695 = vset.pattern.permute.xlu0 0
    %696 = vperm.xlu0 %695, %v598
    %v697 = vpop.permute.xlu0 %696
    %700 = vset.pattern.permute.xlu0 0
    %701 = vperm.xlu0 %700, %v599
    %v702 = vpop.permute.xlu0 %701
    %705 = vset.pattern.permute.xlu0 0
    %706 = vperm.xlu0 %705, %v600
    %v707 = vpop.permute.xlu0 %706
    %710 = vset.pattern.permute.xlu0 0
    %711 = vperm.xlu0 %710, %v601
    %v712 = vpop.permute.xlu0 %711
    %715 = vset.pattern.permute.xlu0 0
    %716 = vperm.xlu0 %715, %v602
    %v717 = vpop.permute.xlu0 %716
    %720 = vset.pattern.permute.xlu0 0
    %721 = vperm.xlu0 %720, %v603
    %v722 = vpop.permute.xlu0 %721
    %725 = vset.pattern.permute.xlu0 0
    %726 = vperm.xlu0 %725, %v604
    %v727 = vpop.permute.xlu0 %726
    %730 = vset.pattern.permute.xlu0 0
    %731 = vperm.xlu0 %730, %v605
    %v732 = vpop.permute.xlu0 %731
    %735 = vset.pattern.permute.xlu0 0
    %736 = vperm.xlu0 %735, %v606
    %v737 = vpop.permute.xlu0 %736
    %740 = vset.pattern.permute.xlu0 0
    %741 = vperm.xlu0 %740, %v607
    %v742 = vpop.permute.xlu0 %741
    %745 = vset.pattern.permute.xlu0 0
    %746 = vperm.xlu0 %745, %v608
    %v747 = vpop.permute.xlu0 %746
    %750 = vset.pattern.permute.xlu0 0
    %751 = vperm.xlu0 %750, %v609
    %v752 = vpop.permute.xlu0 %751
    %755 = vset.pattern.permute.xlu0 0
    %756 = vperm.xlu0 %755, %v610
    %v757 = vpop.permute.xlu0 %756
    %760 = vset.pattern.permute.xlu0 0
    %761 = vperm.xlu0 %760, %v611
    %v762 = vpop.permute.xlu0 %761
    %765 = vset.pattern.permute.xlu0 0
    %766 = vperm.xlu0 %765, %v612
    %v767 = vpop.permute.xlu0 %766
    %770 = vset.pattern.permute.xlu0 0
    %771 = vperm.xlu0 %770, %v613
    %v772 = vpop.permute.xlu0 %771
    %v774 = vsub.f32 %v534, %v697
    %v775 = vsub.f32 %v535, %v702
    %v776 = vsub.f32 %v536, %v707
    %v777 = vsub.f32 %v537, %v712
    %v778 = vsub.f32 %v538, %v717
    %v779 = vsub.f32 %v539, %v722
    %v780 = vsub.f32 %v540, %v727
    %v781 = vsub.f32 %v541, %v732
    %v782 = vsub.f32 %v542, %v737
    %v783 = vsub.f32 %v543, %v742
    %v784 = vsub.f32 %v544, %v747
    %v785 = vsub.f32 %v545, %v752
    %v786 = vsub.f32 %v546, %v757
    %v787 = vsub.f32 %v547, %v762
    %v788 = vsub.f32 %v548, %v767
    %v789 = vsub.f32 %v549, %v772
    %v790 = vmul.f32 %v774, 1.442695
    %v791 = vpow.pop %v790
    %v792 = vmul.f32 %v775, 1.442695
    %v793 = vpow.pop %v792
    %v794 = vmul.f32 %v776, 1.442695
    %v795 = vpow.pop %v794
    %v796 = vmul.f32 %v777, 1.442695
    %v797 = vpow.pop %v796
    %v798 = vmul.f32 %v778, 1.442695
    %v799 = vpow.pop %v798
    %v800 = vmul.f32 %v779, 1.442695
    %v801 = vpow.pop %v800
    %v802 = vmul.f32 %v780, 1.442695
    %v803 = vpow.pop %v802
    %v804 = vmul.f32 %v781, 1.442695
    %v805 = vpow.pop %v804
    %v806 = vmul.f32 %v782, 1.442695
    %v807 = vpow.pop %v806
    %v808 = vmul.f32 %v783, 1.442695
    %v809 = vpow.pop %v808
    %v810 = vmul.f32 %v784, 1.442695
    %v811 = vpow.pop %v810
    %v812 = vmul.f32 %v785, 1.442695
    %v813 = vpow.pop %v812
    %v814 = vmul.f32 %v786, 1.442695
    %v815 = vpow.pop %v814
    %v816 = vmul.f32 %v787, 1.442695
    %v817 = vpow.pop %v816
    %v818 = vmul.f32 %v788, 1.442695
    %v819 = vpow.pop %v818
    %v820 = vmul.f32 %v789, 1.442695
    %v821 = vpow.pop %v820
    %822 = vadd.xlane.f32.xlu0 %v791
    %v823 = vpop.xlane.xlu0 %822
    %824 = vadd.xlane.f32.xlu0 %v793
    %v825 = vpop.xlane.xlu0 %824
    %826 = vadd.xlane.f32.xlu0 %v795
    %v827 = vpop.xlane.xlu0 %826
    %828 = vadd.xlane.f32.xlu0 %v797
    %v829 = vpop.xlane.xlu0 %828
    %830 = vadd.xlane.f32.xlu0 %v799
    %v831 = vpop.xlane.xlu0 %830
    %832 = vadd.xlane.f32.xlu0 %v801
    %v833 = vpop.xlane.xlu0 %832
    %834 = vadd.xlane.f32.xlu0 %v803
    %v835 = vpop.xlane.xlu0 %834
    %836 = vadd.xlane.f32.xlu0 %v805
    %v837 = vpop.xlane.xlu0 %836
    %838 = vadd.xlane.f32.xlu0 %v807
    %v839 = vpop.xlane.xlu0 %838
    %840 = vadd.xlane.f32.xlu0 %v809
    %v841 = vpop.xlane.xlu0 %840
    %842 = vadd.xlane.f32.xlu0 %v811
    %v843 = vpop.xlane.xlu0 %842
    %844 = vadd.xlane.f32.xlu0 %v813
    %v845 = vpop.xlane.xlu0 %844
    %846 = vadd.xlane.f32.xlu0 %v815
    %v847 = vpop.xlane.xlu0 %846
    %848 = vadd.xlane.f32.xlu0 %v817
    %v849 = vpop.xlane.xlu0 %848
    %850 = vadd.xlane.f32.xlu0 %v819
    %v851 = vpop.xlane.xlu0 %850
    %852 = vadd.xlane.f32.xlu0 %v821
    %v853 = vpop.xlane.xlu0 %852
    %v854 = vadd.f32 %v678, %v823
    %v855 = vadd.f32 %v679, %v825
    %v856 = vadd.f32 %v680, %v827
    %v857 = vadd.f32 %v681, %v829
    %v858 = vadd.f32 %v682, %v831
    %v859 = vadd.f32 %v683, %v833
    %v860 = vadd.f32 %v684, %v835
    %v861 = vadd.f32 %v685, %v837
    %v862 = vadd.f32 %v686, %v839
    %v863 = vadd.f32 %v687, %v841
    %v864 = vadd.f32 %v688, %v843
    %v865 = vadd.f32 %v689, %v845
    %v866 = vadd.f32 %v690, %v847
    %v867 = vadd.f32 %v691, %v849
    %v868 = vadd.f32 %v692, %v851
    %v869 = vadd.f32 %v693, %v853
    %vm870 = vcmask 7168
    %871 = vst.msk [vmem:[#allocation4] sm:$0xff] %vm870, %v854
    %872 = vst.msk [vmem:[#allocation4 + $0x8] sm:$0xff] %vm870, %v855
    %873 = vst.msk [vmem:[#allocation4 + $0x10] sm:$0xff] %vm870, %v856
    %874 = vst.msk [vmem:[#allocation4 + $0x18] sm:$0xff] %vm870, %v857
    %875 = vst.msk [vmem:[#allocation4 + $0x20] sm:$0xff] %vm870, %v858
    %876 = vst.msk [vmem:[#allocation4 + $0x28] sm:$0xff] %vm870, %v859
    %877 = vst.msk [vmem:[#allocation4 + $0x30] sm:$0xff] %vm870, %v860
    %878 = vst.msk [vmem:[#allocation4 + $0x38] sm:$0xff] %vm870, %v861
    %879 = vst.msk [vmem:[#allocation4 + $0x40] sm:$0xff] %vm870, %v862
    %880 = vst.msk [vmem:[#allocation4 + $0x48] sm:$0xff] %vm870, %v863
    %881 = vst.msk [vmem:[#allocation4 + $0x50] sm:$0xff] %vm870, %v864
    %882 = vst.msk [vmem:[#allocation4 + $0x58] sm:$0xff] %vm870, %v865
    %883 = vst.msk [vmem:[#allocation4 + $0x60] sm:$0xff] %vm870, %v866
    %884 = vst.msk [vmem:[#allocation4 + $0x68] sm:$0xff] %vm870, %v867
    %885 = vst.msk [vmem:[#allocation4 + $0x70] sm:$0xff] %vm870, %v868
    %886 = vst.msk [vmem:[#allocation4 + $0x78] sm:$0xff] %vm870, %v869
    %887 = vst.msk [vmem:[#allocation3] sm:$0xff] %vm870, %v598
    %888 = vst.msk [vmem:[#allocation3 + $0x8] sm:$0xff] %vm870, %v599
    %889 = vst.msk [vmem:[#allocation3 + $0x10] sm:$0xff] %vm870, %v600
    %890 = vst.msk [vmem:[#allocation3 + $0x18] sm:$0xff] %vm870, %v601
    %891 = vst.msk [vmem:[#allocation3 + $0x20] sm:$0xff] %vm870, %v602
    %892 = vst.msk [vmem:[#allocation3 + $0x28] sm:$0xff] %vm870, %v603
    %893 = vst.msk [vmem:[#allocation3 + $0x30] sm:$0xff] %vm870, %v604
    %894 = vst.msk [vmem:[#allocation3 + $0x38] sm:$0xff] %vm870, %v605
    %895 = vst.msk [vmem:[#allocation3 + $0x40] sm:$0xff] %vm870, %v606
    %896 = vst.msk [vmem:[#allocation3 + $0x48] sm:$0xff] %vm870, %v607
    %897 = vst.msk [vmem:[#allocation3 + $0x50] sm:$0xff] %vm870, %v608
    %898 = vst.msk [vmem:[#allocation3 + $0x58] sm:$0xff] %vm870, %v609
    %899 = vst.msk [vmem:[#allocation3 + $0x60] sm:$0xff] %vm870, %v610
    %900 = vst.msk [vmem:[#allocation3 + $0x68] sm:$0xff] %vm870, %v611
    %901 = vst.msk [vmem:[#allocation3 + $0x70] sm:$0xff] %vm870, %v612
    %902 = vst.msk [vmem:[#allocation3 + $0x78] sm:$0xff] %vm870, %v613
    %p903 = scmp.eq.s32.totalorder 0, 0
    // Predicated region
    $region22: #{tpu_custom_call.1} parent=1 // pred_check
      %p904 = pneg %p903
    $region23: #{tpu_custom_call.1} parent=1 // pred_check_branch
      %906 = sbr.rel (%p904) target = $region25
    $region24: #{tpu_custom_call.1} parent=1 // pred_region
      %v907 = vmul.f32 %v335, %v319
      %v908 = vmul.f32 %v336, %v320
      %v909 = vmul.f32 %v337, %v321
      %v910 = vmul.f32 %v338, %v322
      %v911 = vmul.f32 %v339, %v323
      %v912 = vmul.f32 %v340, %v324
      %v913 = vmul.f32 %v341, %v325
      %v914 = vmul.f32 %v342, %v326
      %v915 = vmul.f32 %v343, %v327
      %v916 = vmul.f32 %v344, %v328
      %v917 = vmul.f32 %v345, %v329
      %v918 = vmul.f32 %v346, %v330
      %v919 = vmul.f32 %v347, %v331
      %v920 = vmul.f32 %v348, %v332
      %v921 = vmul.f32 %v349, %v333
      %v922 = vmul.f32 %v350, %v334
      %923 = vadd.xlane.f32.xlu0 %v907
      %v924 = vpop.xlane.xlu0 %923
      %925 = vadd.xlane.f32.xlu0 %v908
      %v926 = vpop.xlane.xlu0 %925
      %927 = vadd.xlane.f32.xlu0 %v909
      %v928 = vpop.xlane.xlu0 %927
      %929 = vadd.xlane.f32.xlu0 %v910
      %v930 = vpop.xlane.xlu0 %929
      %931 = vadd.xlane.f32.xlu0 %v911
      %v932 = vpop.xlane.xlu0 %931
      %933 = vadd.xlane.f32.xlu0 %v912
      %v934 = vpop.xlane.xlu0 %933
      %935 = vadd.xlane.f32.xlu0 %v913
      %v936 = vpop.xlane.xlu0 %935
      %937 = vadd.xlane.f32.xlu0 %v914
      %v938 = vpop.xlane.xlu0 %937
      %939 = vadd.xlane.f32.xlu0 %v915
      %v940 = vpop.xlane.xlu0 %939
      %941 = vadd.xlane.f32.xlu0 %v916
      %v942 = vpop.xlane.xlu0 %941
      %943 = vadd.xlane.f32.xlu0 %v917
      %v944 = vpop.xlane.xlu0 %943
      %945 = vadd.xlane.f32.xlu0 %v918
      %v946 = vpop.xlane.xlu0 %945
      %947 = vadd.xlane.f32.xlu0 %v919
      %v948 = vpop.xlane.xlu0 %947
      %949 = vadd.xlane.f32.xlu0 %v920
      %v950 = vpop.xlane.xlu0 %949
      %951 = vadd.xlane.f32.xlu0 %v921
      %v952 = vpop.xlane.xlu0 %951
      %953 = vadd.xlane.f32.xlu0 %v922
      %v954 = vpop.xlane.xlu0 %953
      %v955 = vmul.f32 %v924, 14.285714
      %v956 = vmul.f32 %v926, 14.285714
      %v957 = vmul.f32 %v928, 14.285714
      %v958 = vmul.f32 %v930, 14.285714
      %v959 = vmul.f32 %v932, 14.285714
      %v960 = vmul.f32 %v934, 14.285714
      %v961 = vmul.f32 %v936, 14.285714
      %v962 = vmul.f32 %v938, 14.285714
      %v963 = vmul.f32 %v940, 14.285714
      %v964 = vmul.f32 %v942, 14.285714
      %v965 = vmul.f32 %v944, 14.285714
      %v966 = vmul.f32 %v946, 14.285714
      %v967 = vmul.f32 %v948, 14.285714
      %v968 = vmul.f32 %v950, 14.285714
      %v969 = vmul.f32 %v952, 14.285714
      %v970 = vmul.f32 %v954, 14.285714
      %971 = vst.msk [vmem:[#allocation5] sm:$0xff] %vm870, %v955
      %972 = vst.msk [vmem:[#allocation5 + $0x8] sm:$0xff] %vm870, %v956
      %973 = vst.msk [vmem:[#allocation5 + $0x10] sm:$0xff] %vm870, %v957
      %974 = vst.msk [vmem:[#allocation5 + $0x18] sm:$0xff] %vm870, %v958
      %975 = vst.msk [vmem:[#allocation5 + $0x20] sm:$0xff] %vm870, %v959
      %976 = vst.msk [vmem:[#allocation5 + $0x28] sm:$0xff] %vm870, %v960
      %977 = vst.msk [vmem:[#allocation5 + $0x30] sm:$0xff] %vm870, %v961
      %978 = vst.msk [vmem:[#allocation5 + $0x38] sm:$0xff] %vm870, %v962
      %979 = vst.msk [vmem:[#allocation5 + $0x40] sm:$0xff] %vm870, %v963
      %980 = vst.msk [vmem:[#allocation5 + $0x48] sm:$0xff] %vm870, %v964
      %981 = vst.msk [vmem:[#allocation5 + $0x50] sm:$0xff] %vm870, %v965
      %982 = vst.msk [vmem:[#allocation5 + $0x58] sm:$0xff] %vm870, %v966
      %983 = vst.msk [vmem:[#allocation5 + $0x60] sm:$0xff] %vm870, %v967
      %984 = vst.msk [vmem:[#allocation5 + $0x68] sm:$0xff] %vm870, %v968
      %985 = vst.msk [vmem:[#allocation5 + $0x70] sm:$0xff] %vm870, %v969
      %986 = vst.msk [vmem:[#allocation5 + $0x78] sm:$0xff] %vm870, %v970
    $region25: #{tpu_custom_call.1} parent=1 // pred_fallthru
      _
    // Predicated region
    $region26: #{tpu_custom_call.1} parent=1 // pred_check
      %p987 = pneg %p42
    $region27: #{tpu_custom_call.1} parent=1 // pred_check_branch
      %989 = sbr.rel (%p987) target = $region29
    $region28: #{tpu_custom_call.1} parent=1 // pred_region
      %v990 = vld [vmem:[#allocation3] sm:$0xff]
      %v991 = vld [vmem:[#allocation3 + $0x8] sm:$0xff]
      %v992 = vld [vmem:[#allocation3 + $0x10] sm:$0xff]
      %v993 = vld [vmem:[#allocation3 + $0x18] sm:$0xff]
      %v994 = vld [vmem:[#allocation3 + $0x20] sm:$0xff]
      %v995 = vld [vmem:[#allocation3 + $0x28] sm:$0xff]
      %v996 = vld [vmem:[#allocation3 + $0x30] sm:$0xff]
      %v997 = vld [vmem:[#allocation3 + $0x38] sm:$0xff]
      %v998 = vld [vmem:[#allocation3 + $0x40] sm:$0xff]
      %v999 = vld [vmem:[#allocation3 + $0x48] sm:$0xff]
      %v1000 = vld [vmem:[#allocation3 + $0x50] sm:$0xff]
      %v1001 = vld [vmem:[#allocation3 + $0x58] sm:$0xff]
      %v1002 = vld [vmem:[#allocation3 + $0x60] sm:$0xff]
      %v1003 = vld [vmem:[#allocation3 + $0x68] sm:$0xff]
      %v1004 = vld [vmem:[#allocation3 + $0x70] sm:$0xff]
      %v1005 = vld [vmem:[#allocation3 + $0x78] sm:$0xff]
      %v1006 = vld [vmem:[#allocation4] sm:$0xff]
      %v1007 = vld [vmem:[#allocation4 + $0x8] sm:$0xff]
      %v1008 = vld [vmem:[#allocation4 + $0x10] sm:$0xff]
      %v1009 = vld [vmem:[#allocation4 + $0x18] sm:$0xff]
      %v1010 = vld [vmem:[#allocation4 + $0x20] sm:$0xff]
      %v1011 = vld [vmem:[#allocation4 + $0x28] sm:$0xff]
      %v1012 = vld [vmem:[#allocation4 + $0x30] sm:$0xff]
      %v1013 = vld [vmem:[#allocation4 + $0x38] sm:$0xff]
      %v1014 = vld [vmem:[#allocation4 + $0x40] sm:$0xff]
      %v1015 = vld [vmem:[#allocation4 + $0x48] sm:$0xff]
      %v1016 = vld [vmem:[#allocation4 + $0x50] sm:$0xff]
      %v1017 = vld [vmem:[#allocation4 + $0x58] sm:$0xff]
      %v1018 = vld [vmem:[#allocation4 + $0x60] sm:$0xff]
      %v1019 = vld [vmem:[#allocation4 + $0x68] sm:$0xff]
      %v1020 = vld [vmem:[#allocation4 + $0x70] sm:$0xff]
      %v1021 = vld [vmem:[#allocation4 + $0x78] sm:$0xff]
      %v1022 = vlog2.pop %v1006
      %v1023 = vmul.f32 %v1022, 0.6931472
      %v1024 = vlog2.pop %v1007
      %v1025 = vmul.f32 %v1024, 0.6931472
      %v1026 = vlog2.pop %v1008
      %v1027 = vmul.f32 %v1026, 0.6931472
      %v1028 = vlog2.pop %v1009
      %v1029 = vmul.f32 %v1028, 0.6931472
      %v1030 = vlog2.pop %v1010
      %v1031 = vmul.f32 %v1030, 0.6931472
      %v1032 = vlog2.pop %v1011
      %v1033 = vmul.f32 %v1032, 0.6931472
      %v1034 = vlog2.pop %v1012
      %v1035 = vmul.f32 %v1034, 0.6931472
      %v1036 = vlog2.pop %v1013
      %v1037 = vmul.f32 %v1036, 0.6931472
      %v1038 = vlog2.pop %v1014
      %v1039 = vmul.f32 %v1038, 0.6931472
      %v1040 = vlog2.pop %v1015
      %v1041 = vmul.f32 %v1040, 0.6931472
      %v1042 = vlog2.pop %v1016
      %v1043 = vmul.f32 %v1042, 0.6931472
      %v1044 = vlog2.pop %v1017
      %v1045 = vmul.f32 %v1044, 0.6931472
      %v1046 = vlog2.pop %v1018
      %v1047 = vmul.f32 %v1046, 0.6931472
      %v1048 = vlog2.pop %v1019
      %v1049 = vmul.f32 %v1048, 0.6931472
      %v1050 = vlog2.pop %v1020
      %v1051 = vmul.f32 %v1050, 0.6931472
      %v1052 = vlog2.pop %v1021
      %v1053 = vmul.f32 %v1052, 0.6931472
      %v1054 = vadd.f32 %v990, %v1023
      %v1055 = vadd.f32 %v991, %v1025
      %v1056 = vadd.f32 %v992, %v1027
      %v1057 = vadd.f32 %v993, %v1029
      %v1058 = vadd.f32 %v994, %v1031
      %v1059 = vadd.f32 %v995, %v1033
      %v1060 = vadd.f32 %v996, %v1035
      %v1061 = vadd.f32 %v997, %v1037
      %v1062 = vadd.f32 %v998, %v1039
      %v1063 = vadd.f32 %v999, %v1041
      %v1064 = vadd.f32 %v1000, %v1043
      %v1065 = vadd.f32 %v1001, %v1045
      %v1066 = vadd.f32 %v1002, %v1047
      %v1067 = vadd.f32 %v1003, %v1049
      %v1068 = vadd.f32 %v1004, %v1051
      %v1069 = vadd.f32 %v1005, %v1053
      %v1070 = vld [vmem:[#allocation5] sm:$0xff]
      %v1071 = vld [vmem:[#allocation5 + $0x8] sm:$0xff]
      %v1072 = vld [vmem:[#allocation5 + $0x10] sm:$0xff]
      %v1073 = vld [vmem:[#allocation5 + $0x18] sm:$0xff]
      %v1074 = vld [vmem:[#allocation5 + $0x20] sm:$0xff]
      %v1075 = vld [vmem:[#allocation5 + $0x28] sm:$0xff]
      %v1076 = vld [vmem:[#allocation5 + $0x30] sm:$0xff]
      %v1077 = vld [vmem:[#allocation5 + $0x38] sm:$0xff]
      %v1078 = vld [vmem:[#allocation5 + $0x40] sm:$0xff]
      %v1079 = vld [vmem:[#allocation5 + $0x48] sm:$0xff]
      %v1080 = vld [vmem:[#allocation5 + $0x50] sm:$0xff]
      %v1081 = vld [vmem:[#allocation5 + $0x58] sm:$0xff]
      %v1082 = vld [vmem:[#allocation5 + $0x60] sm:$0xff]
      %v1083 = vld [vmem:[#allocation5 + $0x68] sm:$0xff]
      %v1084 = vld [vmem:[#allocation5 + $0x70] sm:$0xff]
      %v1085 = vld [vmem:[#allocation5 + $0x78] sm:$0xff]
      %v1086 = vsub.f32 %v1054, %v1070
      %v1087 = vsub.f32 %v1055, %v1071
      %v1088 = vsub.f32 %v1056, %v1072
      %v1089 = vsub.f32 %v1057, %v1073
      %v1090 = vsub.f32 %v1058, %v1074
      %v1091 = vsub.f32 %v1059, %v1075
      %v1092 = vsub.f32 %v1060, %v1076
      %v1093 = vsub.f32 %v1061, %v1077
      %v1094 = vsub.f32 %v1062, %v1078
      %v1095 = vsub.f32 %v1063, %v1079
      %v1096 = vsub.f32 %v1064, %v1080
      %v1097 = vsub.f32 %v1065, %v1081
      %v1098 = vsub.f32 %v1066, %v1082
      %v1099 = vsub.f32 %v1067, %v1083
      %v1100 = vsub.f32 %v1068, %v1084
      %v1101 = vsub.f32 %v1069, %v1085
      %1102 = vst.msk [vmem:[%s3] sm:$0xff] %vm870, %v1086
      %1103 = vst.msk [vmem:[%s3 + $0x8] sm:$0xff] %vm870, %v1087
      %1104 = vst.msk [vmem:[%s3 + $0x10] sm:$0xff] %vm870, %v1088
      %1105 = vst.msk [vmem:[%s3 + $0x18] sm:$0xff] %vm870, %v1089
      %1106 = vst.msk [vmem:[%s3 + $0x20] sm:$0xff] %vm870, %v1090
      %1107 = vst.msk [vmem:[%s3 + $0x28] sm:$0xff] %vm870, %v1091
      %1108 = vst.msk [vmem:[%s3 + $0x30] sm:$0xff] %vm870, %v1092
      %1109 = vst.msk [vmem:[%s3 + $0x38] sm:$0xff] %vm870, %v1093
      %1110 = vst.msk [vmem:[%s3 + $0x40] sm:$0xff] %vm870, %v1094
      %1111 = vst.msk [vmem:[%s3 + $0x48] sm:$0xff] %vm870, %v1095
      %1112 = vst.msk [vmem:[%s3 + $0x50] sm:$0xff] %vm870, %v1096
      %1113 = vst.msk [vmem:[%s3 + $0x58] sm:$0xff] %vm870, %v1097
      %1114 = vst.msk [vmem:[%s3 + $0x60] sm:$0xff] %vm870, %v1098
      %1115 = vst.msk [vmem:[%s3 + $0x68] sm:$0xff] %vm870, %v1099
      %1116 = vst.msk [vmem:[%s3 + $0x70] sm:$0xff] %vm870, %v1100
      %1117 = vst.msk [vmem:[%s3 + $0x78] sm:$0xff] %vm870, %v1101
    $region29: #{tpu_custom_call.1} parent=1 // pred_fallthru
      _
    // Predicated region
    $region30: #{tpu_custom_call.1} parent=1 // pred_check
      _
    $region31: #{tpu_custom_call.1} parent=1 // pred_check_branch
      %1119 = sbr.rel (0) target = $region33
    $region32: #{tpu_custom_call.1} parent=1 // pred_region
      %s1121 = ssub.s32 2048, 2048
      %1122 = vsyncadd [#allocation8], %s1121
      %s1123 = sshll.u32 [#allocation11], 4
      %s1124 = int_to_ptr.vmem [resolvable:$true] %s1123
      %1129 = dma.vmem_to_hbm [thread:$0]  %s1124, 2048, %s2, [#allocation8], 128, 128, 8
    $region33: #{tpu_custom_call.1} parent=1 // pred_fallthru
      _
    // Predicated region
    $region34: #{tpu_custom_call.1} parent=1 // pred_check
      _
    $region35: #{tpu_custom_call.1} parent=1 // pred_check_branch
      %1131 = sbr.rel (0) target = $region37
    $region36: #{tpu_custom_call.1} parent=1 // pred_region
      _
    $region37: #{tpu_custom_call.1} parent=1 // pred_fallthru
      _
    // Predicated region
    $region38: #{tpu_custom_call.1} parent=1 // pred_check
      _
    $region39: #{tpu_custom_call.1} parent=1 // pred_check_branch
      %1133 = sbr.rel (0) target = $region41
    $region40: #{tpu_custom_call.1} parent=1 // pred_region
      %1134 = dma.done [#allocation8], 2048
    $region41: #{tpu_custom_call.1} parent=1 // pred_fallthru
      _
    // Predicated region
    $region42: #{tpu_custom_call.1} parent=1 // pred_check
      _
    $region43: #{tpu_custom_call.1} parent=1 // pred_check_branch
      %1136 = sbr.rel (0) target = $region45
    $region44: #{tpu_custom_call.1} parent=1 // pred_region
      _
    $region45: #{tpu_custom_call.1} parent=1 // pred_fallthru
      _
    %1137 = vsyncpa [#allocation7], 1
    %1138 = vsyncpa [#allocation10], 1
    %1139 = vsyncpa [#allocation8], 1

</llo_original>
